<compile_context>
chip_gen: v6e
topology: v6e:2x2x1
jax: 0.10.0
libtpu: 0.0.40
codegen_flags: <defaults>
</compile_context>

<pallas_src>
import jax
import jax.numpy as jnp
from jax import lax
from jax.experimental import pallas as pl
from jax.experimental.pallas import tpu as pltpu


def _discriminator_kernel(x_ref, w1_ref, b1_ref, w2_ref, b2_ref, w3t_ref, b3_ref, o_ref):
    cd = x_ref.dtype  # compute (streaming) dtype, e.g. bfloat16

    # Layer 1: [bb, D] @ [D, h1] on the MXU (bf16 in, f32 accumulate); bias + ReLU in f32.
    h = jnp.dot(x_ref[...], w1_ref[...], preferred_element_type=jnp.float32) + b1_ref[...]
    h = jnp.maximum(h, 0.0).astype(cd)

    # Layer 2: [bb, h1] @ [h1, h2].
    h = jnp.dot(h, w2_ref[...], preferred_element_type=jnp.float32) + b2_ref[...]
    h = jnp.maximum(h, 0.0).astype(cd)

    # Head: contract w3t [1, h2] with h [bb, h2] over the feature axis -> logits [1, bb].
    # This puts the batch on the lane axis so the output store is lane-dense (no masked
    # [bb, 1] column stores, contiguous writeback DMA).
    logits = lax.dot_general(
        w3t_ref[...], h,
        dimension_numbers=(((1,), (1,)), ((), ())),
        preferred_element_type=jnp.float32,
    ) + b3_ref[...]                                           # [1, bb] f32

    # Sigmoid: exp + approximate reciprocal both run on the EUP slot.
    o_ref[...] = pl.reciprocal(1.0 + jnp.exp(-logits), approx=True).astype(o_ref.dtype)


def _round_up(x, m):
    return ((x + m - 1) // m) * m


def _auto_block_b(batch):
    # Lane-dense tiles: multiple of 128.  Cap at 1024 rows (plenty to amortize the
    # ~0.35us per-grid-step overhead).  Aim for >= 2 grid steps so v7x's two
    # TensorCores both get work on the "parallel" batch axis.
    return max(128, min(1024, _round_up(pl.cdiv(batch, 2), 128)))


def discriminator_forward(x, params, *, block_b=None, compute_dtype=jnp.bfloat16):
    """x: [B, D].  params: dict with w1 [D,h1], b1 [1,h1], w2 [h1,h2], b2 [1,h2],
    w3t [1,h2] (torch layout), b3 [1,1]; all float32 masters.  Returns [B, 1] float32."""
    B, D = x.shape
    w1 = params["w1"].astype(compute_dtype)
    w2 = params["w2"].astype(compute_dtype)
    w3t = params["w3t"].astype(compute_dtype)
    b1, b2, b3 = params["b1"], params["b2"], params["b3"]     # stay f32 (added post-accumulate)
    h1 = w1.shape[1]
    h2 = w2.shape[1]

    if block_b is None:
        block_b = _auto_block_b(B)
    num_tiles = pl.cdiv(B, block_b)
    b_pad = num_tiles * block_b

    xc = x.astype(compute_dtype)
    if b_pad != B:
        xc = jnp.pad(xc, ((0, b_pad - B), (0, 0)))            # pad tail tile; sliced off below

    rows = lambda i: (i, 0)        # batch-tiled input
    whole = lambda i: (0, 0)       # grid-invariant (VMEM-resident) weights/biases

    out = pl.pallas_call(
        _discriminator_kernel,
        out_shape=jax.ShapeDtypeStruct((1, b_pad), jnp.float32),
        grid_spec=pltpu.PrefetchScalarGridSpec(
            num_scalar_prefetch=0,
            grid=(num_tiles,),
            in_specs=[
                pl.BlockSpec((block_b, D), rows),   # x tile
                pl.BlockSpec((D, h1), whole),       # w1
                pl.BlockSpec((1, h1), whole),       # b1
                pl.BlockSpec((h1, h2), whole),      # w2
                pl.BlockSpec((1, h2), whole),       # b2
                pl.BlockSpec((1, h2), whole),       # w3 (torch layout [1, h2])
                pl.BlockSpec((1, 1), whole),        # b3
            ],
            out_specs=pl.BlockSpec((1, block_b), lambda i: (0, i)),   # lane-dense logits row
        ),
        compiler_params=pltpu.CompilerParams(
            dimension_semantics=("parallel",),
            vmem_limit_bytes=32 * 1024 * 1024,      # explicit guardrail (usage << limit)
        ),
    )(xc, w1, b1, w2, b2, w3t, b3)

    return out.reshape(-1)[:B].reshape(B, 1)


def init_params(key, data_dim, hidden_layers):
    """Deterministic init mimicking torch.nn.Linear: U(-1/sqrt(fan_in), 1/sqrt(fan_in))."""
    # TODO(synk): kernel is specialized to exactly 2 hidden ReLU layers; arbitrary-length
    # hidden_layers / other activations would need stacked weights + an in-kernel loop.
    assert len(hidden_layers) == 2, "fused kernel is written for two hidden layers"
    h1, h2 = hidden_layers
    ks = jax.random.split(key, 6)

    def lin(kw, kb, fan_in, fan_out):
        bound = 1.0 / float(fan_in) ** 0.5
        w = jax.random.uniform(kw, (fan_in, fan_out), jnp.float32, -bound, bound)  # [in, out]
        b = jax.random.uniform(kb, (1, fan_out), jnp.float32, -bound, bound)
        return w, b

    params = {}
    params["w1"], params["b1"] = lin(ks[0], ks[1], data_dim, h1)
    params["w2"], params["b2"] = lin(ks[2], ks[3], h1, h2)
    w3, b3 = lin(ks[4], ks[5], h2, 1)
    params["w3t"] = w3.T          # head weight kept in torch layout [1, h2]
    params["b3"] = b3             # [1, 1]
    return params


def _reference_forward_f32(x, params):
    h = jnp.maximum(x @ params["w1"] + params["b1"], 0.0)
    h = jnp.maximum(h @ params["w2"] + params["b2"], 0.0)
    return jax.nn.sigmoid(h @ params["w3t"].T + params["b3"])


def _reference_forward_mirror(x, params, compute_dtype):
    """Mirrors the kernel's bf16-input / f32-accumulate arithmetic for a tight check."""
    cd = compute_dtype
    h = jnp.dot(x.astype(cd), params["w1"].astype(cd),
                preferred_element_type=jnp.float32) + params["b1"]
    h = jnp.maximum(h, 0.0)
    h = jnp.dot(h.astype(cd), params["w2"].astype(cd),
                preferred_element_type=jnp.float32) + params["b2"]
    h = jnp.maximum(h, 0.0)
    logits = jnp.dot(h.astype(cd), params["w3t"].astype(cd).T,
                     preferred_element_type=jnp.float32) + params["b3"]
    return jax.nn.sigmoid(logits)


if __name__ == "__main__":
    # Small shapes consistent with the module: Discriminator(hidden_layers=[64, 32],
    # activate_function=nn.ReLU, data_dim=32) applied to small batches.
    data_dim = 32
    hidden_layers = (64, 32)

    key = jax.random.PRNGKey(0)
    kx, kp, kx2 = jax.random.split(key, 3)
    params = init_params(kp, data_dim, hidden_layers)

    # Check 1: tiny batch (padded up to one 128-row lane-dense tile).
    B = 8
    x = jax.random.normal(kx, (B, data_dim), dtype=jnp.float32)
    out = jax.block_until_ready(discriminator_forward(x, params))
    assert out.shape == (B, 1)
    assert jnp.allclose(out, _reference_forward_mirror(x, params, jnp.bfloat16), atol=1e-2)
    assert jnp.allclose(out, _reference_forward_f32(x, params), atol=2e-2)

    # Check 2: batch that is not a tile multiple -> exercises padding and a multi-step grid.
    B2 = 300
    x2 = jax.random.normal(kx2, (B2, data_dim), dtype=jnp.float32)
    out2 = jax.block_until_ready(discriminator_forward(x2, params))
    assert out2.shape == (B2, 1)
    assert jnp.allclose(out2, _reference_forward_mirror(x2, params, jnp.bfloat16), atol=1e-2)
    assert jnp.allclose(out2, _reference_forward_f32(x2, params), atol=2e-2)

    print("KERNEL_OK")
</pallas_src>

<mosaic_0001>
module attributes {stable_mosaic.version = 11 : i64} {
  func.func @_discriminator_kernel(%arg0: i32, %arg1: memref<128x32xbf16, #tpu.memory_space<vmem>>, %arg2: memref<32x64xbf16, #tpu.memory_space<vmem>>, %arg3: memref<1x64xf32, #tpu.memory_space<vmem>>, %arg4: memref<64x32xbf16, #tpu.memory_space<vmem>>, %arg5: memref<1x32xf32, #tpu.memory_space<vmem>>, %arg6: memref<1x32xbf16, #tpu.memory_space<vmem>>, %arg7: memref<1x1xf32, #tpu.memory_space<vmem>>, %arg8: memref<1x128xf32, #tpu.memory_space<vmem>>) attributes {dimension_semantics = [#tpu.dimension_semantics<parallel>], iteration_bounds = array<i64: 1>, scalar_prefetch = 0 : i64, scratch_operands = 0 : i64, tpu.core_type = #tpu.core_type<tc>, window_params = [{transform_indices = @transform_0, window_bounds = array<i64: 128, 32>}, {pipeline_mode = #tpu.pipeline_mode<synchronous>, transform_indices = @transform_1, window_bounds = array<i64: 32, 64>}, {pipeline_mode = #tpu.pipeline_mode<synchronous>, transform_indices = @transform_2, window_bounds = array<i64: 1, 64>}, {pipeline_mode = #tpu.pipeline_mode<synchronous>, transform_indices = @transform_3, window_bounds = array<i64: 64, 32>}, {pipeline_mode = #tpu.pipeline_mode<synchronous>, transform_indices = @transform_4, window_bounds = array<i64: 1, 32>}, {pipeline_mode = #tpu.pipeline_mode<synchronous>, transform_indices = @transform_5, window_bounds = array<i64: 1, 32>}, {pipeline_mode = #tpu.pipeline_mode<synchronous>, transform_indices = @transform_6, window_bounds = array<i64: 1, 1>}, {transform_indices = @transform_7, window_bounds = array<i64: 1, 128>}]} {
    %c0 = arith.constant 0 : index
    %c0_0 = arith.constant 0 : index
    %0 = vector.load %arg1[%c0, %c0_0] : memref<128x32xbf16, #tpu.memory_space<vmem>>, vector<128x32xbf16>
    %c0_1 = arith.constant 0 : index
    %c0_2 = arith.constant 0 : index
    %1 = vector.load %arg2[%c0_1, %c0_2] : memref<32x64xbf16, #tpu.memory_space<vmem>>, vector<32x64xbf16>
    %cst = arith.constant dense<0.000000e+00> : vector<128x64xf32>
    %2 = tpu.matmul %0, %1, %cst {dimension_numbers = #tpu.dot_dimension_numbers<[1], [0], [0], [1], [0, 0, 1, 1], [], []>} : vector<128x32xbf16>, vector<32x64xbf16>, vector<128x64xf32> -> vector<128x64xf32>
    %c0_3 = arith.constant 0 : index
    %c0_4 = arith.constant 0 : index
    %3 = vector.load %arg3[%c0_3, %c0_4] : memref<1x64xf32, #tpu.memory_space<vmem>>, vector<1x64xf32>
    %4 = vector.broadcast %3 : vector<1x64xf32> to vector<128x64xf32>
    %5 = arith.addf %2, %4 : vector<128x64xf32>
    %cst_5 = arith.constant 0.000000e+00 : f32
    %6 = vector.broadcast %cst_5 : f32 to vector<128x64xf32>
    %7 = arith.maximumf %5, %6 : vector<128x64xf32>
    %8 = arith.truncf %7 : vector<128x64xf32> to vector<128x64xbf16>
    %c0_6 = arith.constant 0 : index
    %c0_7 = arith.constant 0 : index
    %9 = vector.load %arg4[%c0_6, %c0_7] : memref<64x32xbf16, #tpu.memory_space<vmem>>, vector<64x32xbf16>
    %cst_8 = arith.constant dense<0.000000e+00> : vector<128x32xf32>
    %10 = tpu.matmul %8, %9, %cst_8 {dimension_numbers = #tpu.dot_dimension_numbers<[1], [0], [0], [1], [0, 0, 1, 1], [], []>} : vector<128x64xbf16>, vector<64x32xbf16>, vector<128x32xf32> -> vector<128x32xf32>
    %c0_9 = arith.constant 0 : index
    %c0_10 = arith.constant 0 : index
    %11 = vector.load %arg5[%c0_9, %c0_10] : memref<1x32xf32, #tpu.memory_space<vmem>>, vector<1x32xf32>
    %12 = vector.broadcast %11 : vector<1x32xf32> to vector<128x32xf32>
    %13 = arith.addf %10, %12 : vector<128x32xf32>
    %cst_11 = arith.constant 0.000000e+00 : f32
    %14 = vector.broadcast %cst_11 : f32 to vector<128x32xf32>
    %15 = arith.maximumf %13, %14 : vector<128x32xf32>
    %16 = arith.truncf %15 : vector<128x32xf32> to vector<128x32xbf16>
    %c0_12 = arith.constant 0 : index
    %c0_13 = arith.constant 0 : index
    %17 = vector.load %arg6[%c0_12, %c0_13] : memref<1x32xbf16, #tpu.memory_space<vmem>>, vector<1x32xbf16>
    %cst_14 = arith.constant dense<0.000000e+00> : vector<1x128xf32>
    %18 = tpu.matmul %17, %16, %cst_14 {dimension_numbers = #tpu.dot_dimension_numbers<[1], [1], [0], [0], [0, 0, 1, 0], [], []>} : vector<1x32xbf16>, vector<128x32xbf16>, vector<1x128xf32> -> vector<1x128xf32>
    %c0_15 = arith.constant 0 : index
    %c0_16 = arith.constant 0 : index
    %19 = vector.load %arg7[%c0_15, %c0_16] : memref<1x1xf32, #tpu.memory_space<vmem>>, vector<1x1xf32>
    %20 = vector.broadcast %19 : vector<1x1xf32> to vector<1x128xf32>
    %21 = arith.addf %18, %20 : vector<1x128xf32>
    %cst_17 = arith.constant 0.000000e+00 : f32
    %22 = vector.broadcast %cst_17 : f32 to vector<1x128xf32>
    %23 = arith.subf %22, %21 : vector<1x128xf32>
    %24 = math.exp %23 : vector<1x128xf32>
    %cst_18 = arith.constant 1.000000e+00 : f32
    %25 = vector.broadcast %cst_18 : f32 to vector<1x128xf32>
    %26 = arith.addf %25, %24 : vector<1x128xf32>
    %27 = tpu.reciprocal %26 {approx = true} : vector<1x128xf32> -> vector<1x128xf32>
    %c0_19 = arith.constant 0 : index
    %c0_20 = arith.constant 0 : index
    %28 = vector.load %arg8[%c0_19, %c0_20] : memref<1x128xf32, #tpu.memory_space<vmem>>, vector<1x128xf32>
    tpu.vector_store %arg8[%c0_19, %c0_20], %27 {strides = array<i32>} : memref<1x128xf32, #tpu.memory_space<vmem>>, vector<1x128xf32>,
    return
  }
  func.func @transform_0(%arg0: i32) -> (i32, i32) {
    %c0_i32 = arith.constant 0 : i32
    %c0_i32_0 = arith.constant 0 : i32
    return %arg0, %c0_i32 : i32, i32
  }
  func.func @transform_1(%arg0: i32) -> (i32, i32) {
    %c0_i32 = arith.constant 0 : i32
    %c0_i32_0 = arith.constant 0 : i32
    %c0_i32_1 = arith.constant 0 : i32
    return %c0_i32, %c0_i32_0 : i32, i32
  }
  func.func @transform_2(%arg0: i32) -> (i32, i32) {
    %c0_i32 = arith.constant 0 : i32
    %c0_i32_0 = arith.constant 0 : i32
    %c0_i32_1 = arith.constant 0 : i32
    return %c0_i32, %c0_i32_0 : i32, i32
  }
  func.func @transform_3(%arg0: i32) -> (i32, i32) {
    %c0_i32 = arith.constant 0 : i32
    %c0_i32_0 = arith.constant 0 : i32
    %c0_i32_1 = arith.constant 0 : i32
    return %c0_i32, %c0_i32_0 : i32, i32
  }
  func.func @transform_4(%arg0: i32) -> (i32, i32) {
    %c0_i32 = arith.constant 0 : i32
    %c0_i32_0 = arith.constant 0 : i32
    %c0_i32_1 = arith.constant 0 : i32
    return %c0_i32, %c0_i32_0 : i32, i32
  }
  func.func @transform_5(%arg0: i32) -> (i32, i32) {
    %c0_i32 = arith.constant 0 : i32
    %c0_i32_0 = arith.constant 0 : i32
    %c0_i32_1 = arith.constant 0 : i32
    return %c0_i32, %c0_i32_0 : i32, i32
  }
  func.func @transform_6(%arg0: i32) -> (i32, i32) {
    %c0_i32 = arith.constant 0 : i32
    %c0_i32_0 = arith.constant 0 : i32
    %c0_i32_1 = arith.constant 0 : i32
    return %c0_i32, %c0_i32_0 : i32, i32
  }
  func.func @transform_7(%arg0: i32) -> (i32, i32) {
    %c0_i32 = arith.constant 0 : i32
    %c0_i32_0 = arith.constant 0 : i32
    return %c0_i32, %arg0 : i32, i32
  }
}

</mosaic_0001>

<llo_original>
// kernel: tpu_custom_call.1
$region0: #{tpu_custom_call.1}
  #allocation0 [shape = 'u32[]', space=smem, size = 0x4, offset = 0x4, fixed_abs, tag = 'smem constant byte address 0x4 - core index']
  #allocation1 [shape = 'u32[144,128]{1,0:T(1,128)}', space=vmem, size = 0x12000, scoped, tag = 'internal scratch']
  #allocation2 [shape = 'f32[1,1]{1,0:T(1,128)S(1)}', space=vmem, size = 0x200, scoped, tag = 'scoped memory for tpu_custom_call.1']
  %s0 = inlined_call_operand.vmem [shape: bf16[128,32], index: 0, kind: input, shape index: {}]
  %s1 = inlined_call_operand.vmem [shape: bf16[32,64], index: 1, kind: input, shape index: {}]
  %s2 = inlined_call_operand.vmem [shape: f32[1,64], index: 2, kind: input, shape index: {}]
  %s3 = inlined_call_operand.vmem [shape: bf16[64,32], index: 3, kind: input, shape index: {}]
  %s4 = inlined_call_operand.vmem [shape: f32[1,32], index: 4, kind: input, shape index: {}]
  %s5 = inlined_call_operand.vmem [shape: bf16[1,32], index: 5, kind: input, shape index: {}]
  %s6 = inlined_call_operand.<no memory space> [shape: f32[1,1], index: 6, kind: input, shape index: {}]
  %s7 = inlined_call_operand.hbm [shape: f32[1,128], index: 7, kind: output, shape index: {}]
  %s8 = sld [smem:[#allocation0]]
  $region38: #{tpu_custom_call.1} parent=0
    _
  %s10 = ssub.s32 1, %s8
  %s11 = scalar_select 0, %s10, %s8
  %v12 = vstv %s6
  %13 = vst [vmem:[#allocation2] sm:$0x1] %v12
  $region1: #{tpu_custom_call.1} parent=0
    #allocation3 [shape = 'u8[512]{0}', space=vmem, size = 0x400, scoped, tag = 'output window, operand 0, single buffered']
    #allocation4 [shape = 's32[1]{0}', space=sflag, size = 0x4, scoped, tag = 'scoped memory for tpu_custom_call.1']
    %14 = vsyncpa [#allocation4], 0
    // Predicated region
    $region2: #{tpu_custom_call.1} parent=1 // pred_check
      _
    $region3: #{tpu_custom_call.1} parent=1 // pred_check_branch
      %16 = sbr.rel (0) target = $region5
    $region4: #{tpu_custom_call.1} parent=1 // pred_region
      _
    $region5: #{tpu_custom_call.1} parent=1 // pred_fallthru
      _
    // Predicated region
    $region6: #{tpu_custom_call.1} parent=1 // pred_check
      _
    $region7: #{tpu_custom_call.1} parent=1 // pred_check_branch
      %18 = sbr.rel (0) target = $region9
    $region8: #{tpu_custom_call.1} parent=1 // pred_region
      _
    $region9: #{tpu_custom_call.1} parent=1 // pred_fallthru
      _
    // Predicated region
    $region10: #{tpu_custom_call.1} parent=1 // pred_check
      _
    $region11: #{tpu_custom_call.1} parent=1 // pred_check_branch
      %20 = sbr.rel (0) target = $region13
    $region12: #{tpu_custom_call.1} parent=1 // pred_region
      _
    $region13: #{tpu_custom_call.1} parent=1 // pred_fallthru
      _
    // Predicated region
    $region14: #{tpu_custom_call.1} parent=1 // pred_check
      _
    $region15: #{tpu_custom_call.1} parent=1 // pred_check_branch
      %22 = sbr.rel (0) target = $region17
    $region16: #{tpu_custom_call.1} parent=1 // pred_region
      _
    $region17: #{tpu_custom_call.1} parent=1 // pred_fallthru
      _
    // Predicated region
    $region18: #{tpu_custom_call.1} parent=1 // pred_check
      _
    $region19: #{tpu_custom_call.1} parent=1 // pred_check_branch
      %24 = sbr.rel (0) target = $region21
    $region20: #{tpu_custom_call.1} parent=1 // pred_region
      _
    $region21: #{tpu_custom_call.1} parent=1 // pred_fallthru
      _
    // Predicated region
    $region22: #{tpu_custom_call.1} parent=1 // pred_check
      _
    $region23: #{tpu_custom_call.1} parent=1 // pred_check_branch
      %26 = sbr.rel (0) target = $region25
    $region24: #{tpu_custom_call.1} parent=1 // pred_region
      _
    $region25: #{tpu_custom_call.1} parent=1 // pred_fallthru
      _
    // Predicated region
    $region26: #{tpu_custom_call.1} parent=1 // pred_check
      _
    $region27: #{tpu_custom_call.1} parent=1 // pred_check_branch
      %28 = sbr.rel (0) target = $region29
    $region28: #{tpu_custom_call.1} parent=1 // pred_region
      _
    $region29: #{tpu_custom_call.1} parent=1 // pred_fallthru
      _
    %v30 = vld [vmem:[%s0] sm:$0xf]
    %v31 = vld [vmem:[%s0 + $0x4] sm:$0xf]
    %v32 = vld [vmem:[%s0 + $0x8] sm:$0xf]
    %v33 = vld [vmem:[%s0 + $0xc] sm:$0xf]
    %v34 = vld [vmem:[%s0 + $0x10] sm:$0xf]
    %v35 = vld [vmem:[%s0 + $0x14] sm:$0xf]
    %v36 = vld [vmem:[%s0 + $0x18] sm:$0xf]
    %v37 = vld [vmem:[%s0 + $0x1c] sm:$0xf]
    %v38 = vld [vmem:[%s0 + $0x20] sm:$0xf]
    %v39 = vld [vmem:[%s0 + $0x24] sm:$0xf]
    %v40 = vld [vmem:[%s0 + $0x28] sm:$0xf]
    %v41 = vld [vmem:[%s0 + $0x2c] sm:$0xf]
    %v42 = vld [vmem:[%s0 + $0x30] sm:$0xf]
    %v43 = vld [vmem:[%s0 + $0x34] sm:$0xf]
    %v44 = vld [vmem:[%s0 + $0x38] sm:$0xf]
    %v45 = vld [vmem:[%s0 + $0x3c] sm:$0xf]
    %v46 = vld [vmem:[%s1] sm:$0xf]
    %v47 = vld [vmem:[%s1 + $0x4] sm:$0xf]
    %v48 = vld [vmem:[%s1 + $0x8] sm:$0xf]
    %v49 = vld [vmem:[%s1 + $0xc] sm:$0xf]
    %v50 = vld [vmem:[%s2] sm:$0x1]
    %v52 = vlaneseq
    %v53 = vshrl.u32 %v52, 7
    %v54 = vsub.s32 0, %v53
    %v55 = vrot.slane %v50, %v54
    %v73 = vunpack.c.l.b16 %v30
    %v74 = vunpack.c.l.b16 %v31
    %v75 = vunpack.c.l.b16 %v32
    %v76 = vunpack.c.l.b16 %v33
    %v77 = vunpack.c.l.b16 %v34
    %v78 = vunpack.c.l.b16 %v35
    %v79 = vunpack.c.l.b16 %v36
    %v80 = vunpack.c.l.b16 %v37
    %v81 = vunpack.c.l.b16 %v38
    %v82 = vunpack.c.l.b16 %v39
    %v83 = vunpack.c.l.b16 %v40
    %v84 = vunpack.c.l.b16 %v41
    %v85 = vunpack.c.l.b16 %v42
    %v86 = vunpack.c.l.b16 %v43
    %v87 = vunpack.c.l.b16 %v44
    %v88 = vunpack.c.l.b16 %v45
    %v89 = vpack.c.b16 %v74, %v73
    %v90 = vpack.c.b16 %v76, %v75
    %v91 = vpack.c.b16 %v78, %v77
    %v92 = vpack.c.b16 %v80, %v79
    %v93 = vpack.c.b16 %v82, %v81
    %v94 = vpack.c.b16 %v84, %v83
    %v95 = vpack.c.b16 %v86, %v85
    %v96 = vpack.c.b16 %v88, %v87
    %v101 = vunpack.c.l.b16 %v46
    %v102 = vunpack.c.l.b16 %v47
    %v103 = vunpack.c.l.b16 %v48
    %v104 = vunpack.c.l.b16 %v49
    %v105 = vpack.c.b16 %v102, %v101
    %v106 = vpack.c.b16 %v104, %v103
    %vm109 = vcmask 261120
    %v111 = vsel %vm109, %v89, 0
    %v114 = vsel %vm109, %v90, 0
    %v117 = vsel %vm109, %v91, 0
    %v120 = vsel %vm109, %v92, 0
    %v123 = vsel %vm109, %v93, 0
    %v126 = vsel %vm109, %v94, 0
    %v129 = vsel %vm109, %v95, 0
    %v132 = vsel %vm109, %v96, 0
    %134 = vmatprep.subr.bf16.mxu0 0
    %135 = vmatpush1.bf16.msra.mxu0 0
    %136 = vmatprep.subr.bf16.mxu0 0
    %137 = vmatpush1.bf16.msra.mxu0 0
    %138 = vmatprep.subr.bf16.mxu0 0
    %139 = vmatpush1.bf16.msra.mxu0 0
    %140 = vmatprep.subr.bf16.mxu0 0
    %141 = vmatpush1.bf16.msra.mxu0 0
    %142 = vmatprep.subr.bf16.mxu0 0
    %143 = vmatpush1.bf16.msra.mxu0 0
    %144 = vmatprep.subr.bf16.mxu0 0
    %145 = vmatpush1.bf16.msra.mxu0 0
    %146 = vmatprep.subr.bf16.mxu0 0
    %147 = vmatpush1.bf16.msra.mxu0 %v106
    %148 = vmatprep.subr.bf16.mxu0 0
    %149 = vmatpush1.bf16.msra.mxu0 %v105
    %150 = vmatprep.subr.bf16.mxu0 0
    %151 = vmatpush2.bf16.msra.mxu0 0
    %152 = vmatprep.subr.bf16.mxu0 0
    %153 = vmatpush2.bf16.msra.mxu0 0
    %154 = vmatprep.subr.bf16.mxu0 0
    %155 = vmatpush2.bf16.msra.mxu0 0
    %156 = vmatprep.subr.bf16.mxu0 0
    %157 = vmatpush2.bf16.msra.mxu0 0
    %158 = vmatprep.subr.bf16.mxu0 0
    %159 = vmatpush2.bf16.msra.mxu0 0
    %160 = vmatprep.subr.bf16.mxu0 0
    %161 = vmatpush2.bf16.msra.mxu0 0
    %162 = vmatprep.subr.bf16.mxu0 0
    %163 = vmatpush2.bf16.msra.mxu0 0
    %164 = vmatprep.subr.bf16.mxu0 0
    %165 = vmatpush2.bf16.msra.mxu0 0
    %166 = vmatprep.mubr.bf16.mxu0 0
    %167 = vmatmul.mubr.bf16.gmra.mxu0 %v111
    %v168 = vpop.f32.mrf.mxu0
    %v169 = vadd.f32 %v55, %v168
    %v170 = vpop.f32.mrf.mxu0
    %v171 = vpop.f32.mrf.mxu0
    %v172 = vadd.f32 %v55, %v171
    %v173 = vpop.f32.mrf.mxu0
    %174 = vmatprep.mubr.bf16.mxu0 0
    %175 = vmatmul.mubr.bf16.gmra.mxu0 %v114
    %v176 = vpop.f32.mrf.mxu0
    %v177 = vadd.f32 %v55, %v176
    %v178 = vpop.f32.mrf.mxu0
    %v179 = vpop.f32.mrf.mxu0
    %v180 = vadd.f32 %v55, %v179
    %v181 = vpop.f32.mrf.mxu0
    %182 = vmatprep.mubr.bf16.mxu0 0
    %183 = vmatmul.mubr.bf16.gmra.mxu0 %v117
    %v184 = vpop.f32.mrf.mxu0
    %v185 = vadd.f32 %v55, %v184
    %v186 = vpop.f32.mrf.mxu0
    %v187 = vpop.f32.mrf.mxu0
    %v188 = vadd.f32 %v55, %v187
    %v189 = vpop.f32.mrf.mxu0
    %190 = vmatprep.mubr.bf16.mxu0 0
    %191 = vmatmul.mubr.bf16.gmra.mxu0 %v120
    %v192 = vpop.f32.mrf.mxu0
    %v193 = vadd.f32 %v55, %v192
    %v194 = vpop.f32.mrf.mxu0
    %v195 = vpop.f32.mrf.mxu0
    %v196 = vadd.f32 %v55, %v195
    %v197 = vpop.f32.mrf.mxu0
    %198 = vmatprep.mubr.bf16.mxu0 0
    %199 = vmatmul.mubr.bf16.gmra.mxu0 %v123
    %v200 = vpop.f32.mrf.mxu0
    %v201 = vadd.f32 %v55, %v200
    %v202 = vpop.f32.mrf.mxu0
    %v203 = vpop.f32.mrf.mxu0
    %v204 = vadd.f32 %v55, %v203
    %v205 = vpop.f32.mrf.mxu0
    %206 = vmatprep.mubr.bf16.mxu0 0
    %207 = vmatmul.mubr.bf16.gmra.mxu0 %v126
    %v208 = vpop.f32.mrf.mxu0
    %v209 = vadd.f32 %v55, %v208
    %v210 = vpop.f32.mrf.mxu0
    %v211 = vpop.f32.mrf.mxu0
    %v212 = vadd.f32 %v55, %v211
    %v213 = vpop.f32.mrf.mxu0
    %214 = vmatprep.mubr.bf16.mxu0 0
    %215 = vmatmul.mubr.bf16.gmra.mxu0 %v129
    %v216 = vpop.f32.mrf.mxu0
    %v217 = vadd.f32 %v55, %v216
    %v218 = vpop.f32.mrf.mxu0
    %v219 = vpop.f32.mrf.mxu0
    %v220 = vadd.f32 %v55, %v219
    %v221 = vpop.f32.mrf.mxu0
    %222 = vmatprep.mubr.bf16.mxu0 0
    %223 = vmatmul.mubr.bf16.gmra.mxu0 %v132
    %v224 = vpop.f32.mrf.mxu0
    %v225 = vadd.f32 %v55, %v224
    %v226 = vpop.f32.mrf.mxu0
    %v227 = vpop.f32.mrf.mxu0
    %v228 = vadd.f32 %v55, %v227
    %v229 = vpop.f32.mrf.mxu0
    %230 = vdwg.mxu0
    %v231 = vmax.f32 %v169, 0.0
    %v232 = vmax.f32 %v172, 0.0
    %v233 = vmax.f32 %v177, 0.0
    %v234 = vmax.f32 %v180, 0.0
    %v235 = vmax.f32 %v185, 0.0
    %v236 = vmax.f32 %v188, 0.0
    %v237 = vmax.f32 %v193, 0.0
    %v238 = vmax.f32 %v196, 0.0
    %v239 = vmax.f32 %v201, 0.0
    %v240 = vmax.f32 %v204, 0.0
    %v241 = vmax.f32 %v209, 0.0
    %v242 = vmax.f32 %v212, 0.0
    %v243 = vmax.f32 %v217, 0.0
    %v244 = vmax.f32 %v220, 0.0
    %v245 = vmax.f32 %v225, 0.0
    %v246 = vmax.f32 %v228, 0.0
    %v247 = vpack.c.bf16 %v232, %v231
    %v248 = vpack.c.bf16 %v234, %v233
    %v249 = vpack.c.bf16 %v236, %v235
    %v250 = vpack.c.bf16 %v238, %v237
    %v251 = vpack.c.bf16 %v240, %v239
    %v252 = vpack.c.bf16 %v242, %v241
    %v253 = vpack.c.bf16 %v244, %v243
    %v254 = vpack.c.bf16 %v246, %v245
    %v255 = vld [vmem:[%s3] sm:$0xf]
    %v256 = vld [vmem:[%s3 + $0x4] sm:$0xf]
    %v257 = vld [vmem:[%s3 + $0x8] sm:$0xf]
    %v258 = vld [vmem:[%s3 + $0xc] sm:$0xf]
    %v259 = vld [vmem:[%s3 + $0x10] sm:$0xf]
    %v260 = vld [vmem:[%s3 + $0x14] sm:$0xf]
    %v261 = vld [vmem:[%s3 + $0x18] sm:$0xf]
    %v262 = vld [vmem:[%s3 + $0x1c] sm:$0xf]
    %v263 = vld [vmem:[%s4] sm:$0x1]
    %v265 = vlaneseq
    %v266 = vshrl.u32 %v265, 7
    %v267 = vsub.s32 0, %v266
    %v268 = vrot.slane %v263, %v267
    %v278 = vunpack.c.l.b16 %v255
    %v279 = vunpack.c.l.b16 %v256
    %v280 = vunpack.c.l.b16 %v257
    %v281 = vunpack.c.l.b16 %v258
    %v282 = vunpack.c.l.b16 %v259
    %v283 = vunpack.c.l.b16 %v260
    %v284 = vunpack.c.l.b16 %v261
    %v285 = vunpack.c.l.b16 %v262
    %v286 = vpack.c.b16 %v279, %v278
    %v287 = vpack.c.b16 %v281, %v280
    %v288 = vpack.c.b16 %v283, %v282
    %v289 = vpack.c.b16 %v285, %v284
    %vm294 = vcmask 523264
    %v296 = vsel %vm294, %v247, 0
    %v299 = vsel %vm294, %v248, 0
    %v302 = vsel %vm294, %v249, 0
    %v305 = vsel %vm294, %v250, 0
    %v308 = vsel %vm294, %v251, 0
    %v311 = vsel %vm294, %v252, 0
    %v314 = vsel %vm294, %v253, 0
    %v317 = vsel %vm294, %v254, 0
    %319 = vmatprep.subr.bf16.mxu0 0
    %320 = vmatpush1.bf16.msra.mxu0 0
    %321 = vmatprep.subr.bf16.mxu0 0
    %322 = vmatpush1.bf16.msra.mxu0 0
    %323 = vmatprep.subr.bf16.mxu0 0
    %324 = vmatpush1.bf16.msra.mxu0 0
    %325 = vmatprep.subr.bf16.mxu0 0
    %326 = vmatpush1.bf16.msra.mxu0 0
    %327 = vmatprep.subr.bf16.mxu0 0
    %328 = vmatpush1.bf16.msra.mxu0 %v289
    %329 = vmatprep.subr.bf16.mxu0 0
    %330 = vmatpush1.bf16.msra.mxu0 %v288
    %331 = vmatprep.subr.bf16.mxu0 0
    %332 = vmatpush1.bf16.msra.mxu0 %v287
    %333 = vmatprep.subr.bf16.mxu0 0
    %334 = vmatpush1.bf16.msra.mxu0 %v286
    %335 = vmatprep.subr.bf16.mxu0 0
    %336 = vmatpush2.bf16.msra.mxu0 0
    %337 = vmatprep.subr.bf16.mxu0 0
    %338 = vmatpush2.bf16.msra.mxu0 0
    %339 = vmatprep.subr.bf16.mxu0 0
    %340 = vmatpush2.bf16.msra.mxu0 0
    %341 = vmatprep.subr.bf16.mxu0 0
    %342 = vmatpush2.bf16.msra.mxu0 0
    %343 = vmatprep.subr.bf16.mxu0 0
    %344 = vmatpush2.bf16.msra.mxu0 0
    %345 = vmatprep.subr.bf16.mxu0 0
    %346 = vmatpush2.bf16.msra.mxu0 0
    %347 = vmatprep.subr.bf16.mxu0 0
    %348 = vmatpush2.bf16.msra.mxu0 0
    %349 = vmatprep.subr.bf16.mxu0 0
    %350 = vmatpush2.bf16.msra.mxu0 0
    %351 = vmatprep.mubr.bf16.mxu0 0
    %352 = vmatmul.mubr.bf16.gmra.mxu0 %v296
    %v353 = vpop.f32.mrf.mxu0
    %v354 = vadd.f32 %v268, %v353
    %v355 = vpop.f32.mrf.mxu0
    %v356 = vpop.f32.mrf.mxu0
    %v357 = vadd.f32 %v268, %v356
    %v358 = vpop.f32.mrf.mxu0
    %359 = vmatprep.mubr.bf16.mxu0 0
    %360 = vmatmul.mubr.bf16.gmra.mxu0 %v299
    %v361 = vpop.f32.mrf.mxu0
    %v362 = vadd.f32 %v268, %v361
    %v363 = vpop.f32.mrf.mxu0
    %v364 = vpop.f32.mrf.mxu0
    %v365 = vadd.f32 %v268, %v364
    %v366 = vpop.f32.mrf.mxu0
    %367 = vmatprep.mubr.bf16.mxu0 0
    %368 = vmatmul.mubr.bf16.gmra.mxu0 %v302
    %v369 = vpop.f32.mrf.mxu0
    %v370 = vadd.f32 %v268, %v369
    %v371 = vpop.f32.mrf.mxu0
    %v372 = vpop.f32.mrf.mxu0
    %v373 = vadd.f32 %v268, %v372
    %v374 = vpop.f32.mrf.mxu0
    %375 = vmatprep.mubr.bf16.mxu0 0
    %376 = vmatmul.mubr.bf16.gmra.mxu0 %v305
    %v377 = vpop.f32.mrf.mxu0
    %v378 = vadd.f32 %v268, %v377
    %v379 = vpop.f32.mrf.mxu0
    %v380 = vpop.f32.mrf.mxu0
    %v381 = vadd.f32 %v268, %v380
    %v382 = vpop.f32.mrf.mxu0
    %383 = vmatprep.mubr.bf16.mxu0 0
    %384 = vmatmul.mubr.bf16.gmra.mxu0 %v308
    %v385 = vpop.f32.mrf.mxu0
    %v386 = vadd.f32 %v268, %v385
    %v387 = vpop.f32.mrf.mxu0
    %v388 = vpop.f32.mrf.mxu0
    %v389 = vadd.f32 %v268, %v388
    %v390 = vpop.f32.mrf.mxu0
    %391 = vmatprep.mubr.bf16.mxu0 0
    %392 = vmatmul.mubr.bf16.gmra.mxu0 %v311
    %v393 = vpop.f32.mrf.mxu0
    %v394 = vadd.f32 %v268, %v393
    %v395 = vpop.f32.mrf.mxu0
    %v396 = vpop.f32.mrf.mxu0
    %v397 = vadd.f32 %v268, %v396
    %v398 = vpop.f32.mrf.mxu0
    %399 = vmatprep.mubr.bf16.mxu0 0
    %400 = vmatmul.mubr.bf16.gmra.mxu0 %v314
    %v401 = vpop.f32.mrf.mxu0
    %v402 = vadd.f32 %v268, %v401
    %v403 = vpop.f32.mrf.mxu0
    %v404 = vpop.f32.mrf.mxu0
    %v405 = vadd.f32 %v268, %v404
    %v406 = vpop.f32.mrf.mxu0
    %407 = vmatprep.mubr.bf16.mxu0 0
    %408 = vmatmul.mubr.bf16.gmra.mxu0 %v317
    %v409 = vpop.f32.mrf.mxu0
    %v410 = vadd.f32 %v268, %v409
    %v411 = vpop.f32.mrf.mxu0
    %v412 = vpop.f32.mrf.mxu0
    %v413 = vadd.f32 %v268, %v412
    %v414 = vpop.f32.mrf.mxu0
    %415 = vdwg.mxu0
    %v416 = vmax.f32 %v354, 0.0
    %v417 = vmax.f32 %v357, 0.0
    %v418 = vmax.f32 %v362, 0.0
    %v419 = vmax.f32 %v365, 0.0
    %v420 = vmax.f32 %v370, 0.0
    %v421 = vmax.f32 %v373, 0.0
    %v422 = vmax.f32 %v378, 0.0
    %v423 = vmax.f32 %v381, 0.0
    %v424 = vmax.f32 %v386, 0.0
    %v425 = vmax.f32 %v389, 0.0
    %v426 = vmax.f32 %v394, 0.0
    %v427 = vmax.f32 %v397, 0.0
    %v428 = vmax.f32 %v402, 0.0
    %v429 = vmax.f32 %v405, 0.0
    %v430 = vmax.f32 %v410, 0.0
    %v431 = vmax.f32 %v413, 0.0
    %v432 = vpack.c.bf16 %v417, %v416
    %v433 = vpack.c.bf16 %v419, %v418
    %v434 = vpack.c.bf16 %v421, %v420
    %v435 = vpack.c.bf16 %v423, %v422
    %v436 = vpack.c.bf16 %v425, %v424
    %v437 = vpack.c.bf16 %v427, %v426
    %v438 = vpack.c.bf16 %v429, %v428
    %v439 = vpack.c.bf16 %v431, %v430
    %v440 = vld [vmem:[%s5] sm:$0x1]
    %v441 = vld [vmem:[#allocation2] sm:$0x1]
    %443 = vset.pattern.permute.xlu0 0
    %444 = vperm.xlu0 %443, %v441
    %v445 = vpop.permute.xlu0 %444
    %v447 = vlaneseq
    %v448 = vshrl.u32 %v447, 7
    %v449 = vsub.s32 0, %v448
    %v450 = vrot.slane %v445, %v449
    %v452 = vsel %vm109, %v440, 0
    %v455 = vsel %vm109, %v432, 0
    %v458 = vsel %vm109, %v433, 0
    %v461 = vsel %vm109, %v434, 0
    %v464 = vsel %vm109, %v435, 0
    %v467 = vsel %vm109, %v436, 0
    %v470 = vsel %vm109, %v437, 0
    %v473 = vsel %vm109, %v438, 0
    %v476 = vsel %vm109, %v439, 0
    %478 = vmatprep.subr.bf16.mxu0 0
    %479 = vmatpush1.bf16.xpose.msra.mxu0 %v476
    %480 = vmatprep.subr.bf16.mxu0 0
    %481 = vmatpush1.bf16.xpose.msra.mxu0 %v473
    %482 = vmatprep.subr.bf16.mxu0 0
    %483 = vmatpush1.bf16.xpose.msra.mxu0 %v470
    %484 = vmatprep.subr.bf16.mxu0 0
    %485 = vmatpush1.bf16.xpose.msra.mxu0 %v467
    %486 = vmatprep.subr.bf16.mxu0 0
    %487 = vmatpush1.bf16.xpose.msra.mxu0 %v464
    %488 = vmatprep.subr.bf16.mxu0 0
    %489 = vmatpush1.bf16.xpose.msra.mxu0 %v461
    %490 = vmatprep.subr.bf16.mxu0 0
    %491 = vmatpush1.bf16.xpose.msra.mxu0 %v458
    %492 = vmatprep.subr.bf16.mxu0 0
    %493 = vmatpush1.bf16.xpose.msra.mxu0 %v455
    %494 = vmatprep.subr.bf16.mxu0 0
    %495 = vmatpush2.bf16.xpose.msra.mxu0 0
    %496 = vmatprep.subr.bf16.mxu0 0
    %497 = vmatpush2.bf16.xpose.msra.mxu0 0
    %498 = vmatprep.subr.bf16.mxu0 0
    %499 = vmatpush2.bf16.xpose.msra.mxu0 0
    %500 = vmatprep.subr.bf16.mxu0 0
    %501 = vmatpush2.bf16.xpose.msra.mxu0 0
    %502 = vmatprep.subr.bf16.mxu0 0
    %503 = vmatpush2.bf16.xpose.msra.mxu0 0
    %504 = vmatprep.subr.bf16.mxu0 0
    %505 = vmatpush2.bf16.xpose.msra.mxu0 0
    %506 = vmatprep.subr.bf16.mxu0 0
    %507 = vmatpush2.bf16.xpose.msra.mxu0 0
    %508 = vmatprep.subr.bf16.mxu0 0
    %509 = vmatpush2.bf16.xpose.msra.mxu0 0
    %510 = vmatprep.mubr.bf16.mxu0 0
    %511 = vmatmul.mubr.bf16.gmra.mxu0 %v452
    %v512 = vpop.f32.mrf.mxu0
    %v513 = vadd.f32 %v450, %v512
    %v514 = vpop.f32.mrf.mxu0
    %v515 = vpop.f32.mrf.mxu0
    %v516 = vpop.f32.mrf.mxu0
    %517 = vdwg.mxu0
    %v518 = vsub.f32 0.0, %v513
    %v519 = vmul.f32 %v518, 1.442695
    %v520 = vpow.pop %v519
    %v521 = vadd.f32 %v520, 1.0
    %v522 = vrcp.pop %v521
    %523 = vst [vmem:[#allocation3] sm:$0x1] %v522
    // Predicated region
    $region30: #{tpu_custom_call.1} parent=1 // pred_check
      _
    $region31: #{tpu_custom_call.1} parent=1 // pred_check_branch
      %525 = sbr.rel (0) target = $region33
    $region32: #{tpu_custom_call.1} parent=1 // pred_region
      %s527 = ssub.s32 16, 16
      %528 = vsyncadd [#allocation4], %s527
      %s530 = sshll.u32 [#allocation3], 4
      %s531 = int_to_ptr.vmem [resolvable:$true] %s530
      %533 = dma.vmem_to_hbm [thread:$0]  %s531, 16, %s7, [#allocation4]
    $region33: #{tpu_custom_call.1} parent=1 // pred_fallthru
      _
    // Predicated region
    $region34: #{tpu_custom_call.1} parent=1 // pred_check
      _
    $region35: #{tpu_custom_call.1} parent=1 // pred_check_branch
      %535 = sbr.rel (0) target = $region37
    $region36: #{tpu_custom_call.1} parent=1 // pred_region
      %536 = dma.done [#allocation4], 16
    $region37: #{tpu_custom_call.1} parent=1 // pred_fallthru
      _
    %537 = vsyncpa [#allocation4], 1

</llo_original>
